<compile_context>
chip_gen: v6e
topology: v6e:2x2x1
jax: 0.10.0
libtpu: 0.0.40
codegen_flags: <defaults>
</compile_context>

<pallas_src>
import jax
import jax.numpy as jnp
from jax.experimental import pallas as pl
from jax.experimental.pallas import tpu as pltpu

EPS = 1e-5


# --------------------------------------------------------------------------------------
# helpers
# --------------------------------------------------------------------------------------
def _round_up(x, m):
    return (x + m - 1) // m * m


def _pad_dim(a, axis, new_size):
    pad = new_size - a.shape[axis]
    if pad == 0:
        return a
    widths = [(0, 0)] * a.ndim
    widths[axis] = (0, pad)
    return jnp.pad(a, widths)


def _col(v, c, cp):
    return _pad_dim(v.reshape(c, 1).astype(jnp.float32), 0, cp)


def _pack_conv_taps(w, cout_p, cin_p):
    """OIHW (Cout, Cin, 3, 3) -> (9, CoutP, CinP) bf16; tap t = (kh*3 + kw)."""
    cout, cin = w.shape[0], w.shape[1]
    w = jnp.transpose(w, (2, 3, 0, 1)).reshape(9, cout, cin)
    w = _pad_dim(_pad_dim(w, 1, cout_p), 2, cin_p)
    return w.astype(jnp.bfloat16)


def _tap_conv3x3(h, w_ref, masks, offsets, full_taps, hwp):
    """3x3 conv (padding=1) of a channels-first (C, HWP) slab via 9-tap accumulation.

    Per tap: XLU lane roll + precomputed border-mask multiply + bf16 cast + one MXU dot
    into an f32 accumulator.  w_ref holds the taps as a (9, CoutP, C) bf16 resident.
    """
    acc = None
    for t, off in enumerate(offsets):
        slab = h if off == 0 else pltpu.roll(h, (-off) % hwp, 1)
        if t not in full_taps:
            slab = slab * masks[t:t + 1, :]
        d = jnp.dot(w_ref[t], slab.astype(jnp.bfloat16),
                    preferred_element_type=jnp.float32)
        acc = d if acc is None else acc + d
    return acc


# --------------------------------------------------------------------------------------
# ResnetBlock forward
# --------------------------------------------------------------------------------------
def resnet_block(x_nchw, params):
    N, Cin, H, W = x_nchw.shape
    Cout = params["conv1_w"].shape[0]
    HW = H * W

    # padding: channels to the f32 sublane granularity (8), spatial to the lane
    # granularity (128), batch to a multiple of the batch tile.
    CinP = _round_up(Cin, 8)
    CoutP = _round_up(Cout, 8)
    HWP = _round_up(HW, 128)
    B_TILE = min(N, 8)            # re-derive against the per-generation VMEM budget
    N_pad = _round_up(N, B_TILE)
    G = N_pad // B_TILE

    # activations: channels-first with spatial flattened onto lanes (free reshape)
    xf = x_nchw.reshape(N, Cin, HW)
    xf = _pad_dim(_pad_dim(_pad_dim(xf, 2, HWP), 1, CinP), 0, N_pad)   # (N_pad,CinP,HWP)

    # ---- one-time parameter packing (outside the kernels / hot path) ----
    w1 = _pack_conv_taps(params["conv1_w"], CoutP, CinP)    # (9, CoutP, CinP) bf16
    w2 = _pack_conv_taps(params["conv2_w"], CoutP, CoutP)   # (9, CoutP, CoutP) bf16

    if "proj_w" in params:                       # in_channels != out_channels
        wp = params["proj_w"][:, :, 0, 0].astype(jnp.float32)
        pb = params["proj_b"].astype(jnp.float32)
    else:                                        # nn.Identity()  (Cin == Cout)
        wp = jnp.eye(Cout, Cin, dtype=jnp.float32)
        pb = jnp.zeros((Cout,), jnp.float32)
    wp = _pad_dim(_pad_dim(wp, 0, CoutP), 1, CinP)          # (CoutP, CinP) f32 (residual path)

    g1 = _col(params["bn1_gamma"], Cin, CinP)
    b1 = _col(params["bn1_beta"], Cin, CinP)
    g2 = _col(params["bn2_gamma"], Cout, CoutP)
    b2 = _col(params["bn2_beta"], Cout, CoutP)
    cb1 = _col(params["conv1_b"], Cout, CoutP)              # conv1 bias
    b2p = _col(params["conv2_b"].astype(jnp.float32) + pb, Cout, CoutP)  # conv2+proj bias

    # precomputed per-tap border masks (and lane validity if HW was padded to HWP)
    pos = jnp.arange(HWP, dtype=jnp.int32)
    row = pos // W
    colv = pos % W
    lane_ok = pos < HW
    mask_rows = []
    for dy in (-1, 0, 1):
        for dx in (-1, 0, 1):
            m = lane_ok
            if dy == -1:
                m = m & (row >= 1)
            elif dy == 1:
                m = m & (row <= H - 2)
            if dx == -1:
                m = m & (colv >= 1)
            elif dx == 1:
                m = m & (colv <= W - 2)
            mask_rows.append(m)
    masks = jnp.stack(mask_rows, axis=0).astype(jnp.float32)     # (9, HWP)
    OFFSETS = tuple(dy * W + dx for dy in (-1, 0, 1) for dx in (-1, 0, 1))
    FULL_TAPS = frozenset({4}) if HWP == HW else frozenset()     # center tap mask == ones

    # stage-2 bias: lane-masked only when HW was padded (keeps padded lanes == 0 so
    # the BN2 statistics stay exact)
    cb1_res = cb1 if HWP == HW else cb1 * lane_ok.astype(jnp.float32)[None, :]

    # ---- kernels (closures over static shapes) ----
    def stats_kernel(x_ref, s_ref, q_ref):
        s = jnp.zeros((CinP, 1), jnp.float32)
        q = jnp.zeros((CinP, 1), jnp.float32)
        for b in range(B_TILE):
            x = x_ref[b].astype(jnp.float32)                     # (CinP, HWP)
            s = s + jnp.sum(x, axis=1, keepdims=True)
            q = q + jnp.sum(x * x, axis=1, keepdims=True)
        s_ref[...] = s
        q_ref[...] = q

    def stage2_kernel(x_ref, sc_ref, sh_ref, w_ref, cb_ref, m_ref,
                      y_ref, s_ref, q_ref):
        msk = m_ref[...]
        sc = sc_ref[...]
        sh = sh_ref[...]
        cb = cb_ref[...]
        s = jnp.zeros((CoutP, 1), jnp.float32)
        q = jnp.zeros((CoutP, 1), jnp.float32)
        for b in range(B_TILE):
            x = x_ref[b].astype(jnp.float32)
            h = jnp.maximum(x * sc + sh, 0.0)                    # folded BN1 + ReLU
            y = _tap_conv3x3(h, w_ref, msk, OFFSETS, FULL_TAPS, HWP) + cb
            if N_pad != N:                                       # mask padded images out of stats
                wimg = jnp.where(pl.program_id(0) * B_TILE + b < N, 1.0, 0.0)
                s = s + wimg * jnp.sum(y, axis=1, keepdims=True)
                q = q + wimg * jnp.sum(y * y, axis=1, keepdims=True)
            else:
                s = s + jnp.sum(y, axis=1, keepdims=True)
                q = q + jnp.sum(y * y, axis=1, keepdims=True)
            y_ref[b] = y.astype(jnp.bfloat16)                    # bf16 intermediate
        s_ref[...] = s
        q_ref[...] = q

    def stage3_kernel(x_ref, y_ref, sc_ref, sh_ref, w2_ref, wp_ref, bb_ref, m_ref,
                      o_ref):
        msk = m_ref[...]
        sc = sc_ref[...]
        sh = sh_ref[...]
        bb = bb_ref[...]
        wproj = wp_ref[...]
        for b in range(B_TILE):
            h = jnp.maximum(y_ref[b].astype(jnp.float32) * sc + sh, 0.0)   # BN2 + ReLU
            # 1x1 projection / residual path in f32 (small K), same f32 accumulator
            acc = jnp.dot(wproj, x_ref[b].astype(jnp.float32),
                          preferred_element_type=jnp.float32)
            acc = acc + _tap_conv3x3(h, w2_ref, msk, OFFSETS, FULL_TAPS, HWP)
            o_ref[b] = (acc + bb).astype(o_ref.dtype)

    # ---- pallas_call plumbing ----
    vmem_limit = 48 * 1024 * 1024   # fits v7x (64 MiB); raise to 64-96 MiB on v5e/v6e
    cp = pltpu.CompilerParams(dimension_semantics=("parallel",),
                              vmem_limit_bytes=vmem_limit)

    def resident(shape):
        nd = len(shape)
        return pl.BlockSpec(shape, lambda g, _nd=nd: (0,) * _nd)

    def part(c):   # per-grid-step partial-sum output (no carried accumulator)
        return pl.BlockSpec((None, c, 1), lambda g: (g, 0, 0))

    x_spec = pl.BlockSpec((B_TILE, CinP, HWP), lambda g: (g, 0, 0))
    y_spec = pl.BlockSpec((B_TILE, CoutP, HWP), lambda g: (g, 0, 0))
    f32 = jnp.float32

    # stage 1: BN1 partial statistics (fully parallel over batch tiles)
    s1p, q1p = pl.pallas_call(
        stats_kernel,
        grid=(G,),
        in_specs=[x_spec],
        out_specs=(part(CinP), part(CinP)),
        out_shape=(jax.ShapeDtypeStruct((G, CinP, 1), f32),
                   jax.ShapeDtypeStruct((G, CinP, 1), f32)),
        compiler_params=cp,
    )(xf)

    # tiny wrapper reduce + BN fold (scale/shift), variance clamped to >= 0
    cnt = float(N * HW)

    def fold(sp, qp, gamma, beta):
        s = jnp.sum(sp, axis=0)
        q = jnp.sum(qp, axis=0)
        mean = s / cnt
        var = jnp.maximum(q / cnt - mean * mean, 0.0)
        scale = gamma * jax.lax.rsqrt(var + EPS)
        shift = beta - mean * scale
        return scale, shift

    sc1, sh1 = fold(s1p, q1p, g1, b1)

    # stage 2: folded BN1 + ReLU + conv1 (9-tap accumulation) + BN2 partial statistics
    y1, s2p, q2p = pl.pallas_call(
        stage2_kernel,
        grid=(G,),
        in_specs=[x_spec, resident((CinP, 1)), resident((CinP, 1)),
                  resident(w1.shape), resident(cb1_res.shape), resident(masks.shape)],
        out_specs=(y_spec, part(CoutP), part(CoutP)),
        out_shape=(jax.ShapeDtypeStruct((N_pad, CoutP, HWP), jnp.bfloat16),
                   jax.ShapeDtypeStruct((G, CoutP, 1), f32),
                   jax.ShapeDtypeStruct((G, CoutP, 1), f32)),
        compiler_params=cp,
    )(xf, sc1, sh1, w1, cb1_res, masks)

    sc2, sh2 = fold(s2p, q2p, g2, b2)

    # stage 3: folded BN2 + ReLU + conv2 (taps) + 1x1 projection + residual
    out = pl.pallas_call(
        stage3_kernel,
        grid=(G,),
        in_specs=[x_spec, y_spec, resident((CoutP, 1)), resident((CoutP, 1)),
                  resident(w2.shape), resident(wp.shape), resident(b2p.shape),
                  resident(masks.shape)],
        out_specs=pl.BlockSpec((B_TILE, CoutP, HWP), lambda g: (g, 0, 0)),
        out_shape=jax.ShapeDtypeStruct((N_pad, CoutP, HWP), x_nchw.dtype),
        compiler_params=cp,
    )(xf, y1, sc2, sh2, w2, wp, b2p, masks)

    return out[:N, :Cout, :HW].reshape(N, Cout, H, W)


# ---------------- pure-JAX reference (NCHW, mirrors the PyTorch forward) ----------------
def ref_resnet_block(x, params):
    def bn(h, gamma, beta):
        mean = jnp.mean(h, axis=(0, 2, 3), keepdims=True)
        var = jnp.mean((h - mean) ** 2, axis=(0, 2, 3), keepdims=True)
        return ((h - mean) / jnp.sqrt(var + EPS)) * gamma.reshape(1, -1, 1, 1) \
            + beta.reshape(1, -1, 1, 1)

    def conv(h, w, b, pad):
        out = jax.lax.conv_general_dilated(
            h, w, (1, 1), [(pad, pad), (pad, pad)],
            dimension_numbers=("NCHW", "OIHW", "NCHW"))
        return out + b.reshape(1, -1, 1, 1)

    h = jnp.maximum(bn(x, params["bn1_gamma"], params["bn1_beta"]), 0.0)
    h = conv(h, params["conv1_w"], params["conv1_b"], 1)
    h = jnp.maximum(bn(h, params["bn2_gamma"], params["bn2_beta"]), 0.0)
    h = conv(h, params["conv2_w"], params["conv2_b"], 1)
    proj = conv(x, params["proj_w"], params["proj_b"], 0)
    return proj + h


if __name__ == "__main__":
    key = jax.random.PRNGKey(0)
    N, Cin, Cout, H, W = 2, 4, 8, 16, 16
    ks = jax.random.split(key, 9)

    params = {
        "bn1_gamma": 1.0 + 0.1 * jax.random.normal(ks[0], (Cin,), jnp.float32),
        "bn1_beta": 0.1 * jax.random.normal(ks[1], (Cin,), jnp.float32),
        "conv1_w": 0.1 * jax.random.normal(ks[2], (Cout, Cin, 3, 3), jnp.float32),
        "conv1_b": 0.1 * jax.random.normal(ks[3], (Cout,), jnp.float32),
        "bn2_gamma": 1.0 + 0.1 * jax.random.normal(ks[4], (Cout,), jnp.float32),
        "bn2_beta": 0.1 * jax.random.normal(ks[5], (Cout,), jnp.float32),
        "conv2_w": 0.1 * jax.random.normal(ks[6], (Cout, Cout, 3, 3), jnp.float32),
        "conv2_b": 0.1 * jax.random.normal(ks[7], (Cout,), jnp.float32),
        "proj_w": 0.1 * jax.random.normal(ks[8], (Cout, Cin, 1, 1), jnp.float32),
        "proj_b": 0.1 * jax.random.normal(ks[0], (Cout,), jnp.float32),
    }
    x = jax.random.normal(ks[1], (N, Cin, H, W), jnp.float32)

    out = jax.block_until_ready(resnet_block(x, params))

    ref = ref_resnet_block(x, params)
    assert out.shape == ref.shape == (N, Cout, H, W)
    max_err = float(jnp.max(jnp.abs(out - ref)))
    if not bool(jnp.allclose(out, ref, atol=5e-2, rtol=5e-2)):
        raise AssertionError(f"kernel/ref mismatch, max abs err = {max_err}")
    print("KERNEL_OK")
</pallas_src>

<mosaic_0001>
module attributes {stable_mosaic.version = 11 : i64} {
  func.func @stats_kernel(%arg0: i32, %arg1: memref<2x8x256xf32, #tpu.memory_space<vmem>>, %arg2: memref<1x8x1xf32, #tpu.memory_space<vmem>>, %arg3: memref<1x8x1xf32, #tpu.memory_space<vmem>>) attributes {dimension_semantics = [#tpu.dimension_semantics<parallel>], iteration_bounds = array<i64: 1>, scalar_prefetch = 0 : i64, scratch_operands = 0 : i64, tpu.core_type = #tpu.core_type<tc>, window_params = [{transform_indices = @transform_0, window_bounds = array<i64: 2, 8, 256>}, {transform_indices = @transform_1, window_bounds = array<i64: 1, 8, 1>}, {transform_indices = @transform_2, window_bounds = array<i64: 1, 8, 1>}]} {
    %cst = arith.constant 0.000000e+00 : f32
    %0 = vector.broadcast %cst : f32 to vector<8x1xf32>
    %cst_0 = arith.constant 0.000000e+00 : f32
    %1 = vector.broadcast %cst_0 : f32 to vector<8x1xf32>
    %c0 = arith.constant 0 : index
    %c0_1 = arith.constant 0 : index
    %c0_2 = arith.constant 0 : index
    %2 = vector.load %arg1[%c0, %c0_1, %c0_2] : memref<2x8x256xf32, #tpu.memory_space<vmem>>, vector<1x8x256xf32>
    %3 = vector.shape_cast %2 : vector<1x8x256xf32> to vector<8x256xf32>
    %cst_3 = arith.constant dense<0.000000e+00> : vector<8xf32>
    %4 = vector.multi_reduction <add>, %3, %cst_3 [1] : vector<8x256xf32> to vector<8xf32>
    %5 = vector.shape_cast %4 : vector<8xf32> to vector<8x1xf32>
    %6 = arith.addf %0, %5 : vector<8x1xf32>
    %7 = arith.mulf %3, %3 : vector<8x256xf32>
    %cst_4 = arith.constant dense<0.000000e+00> : vector<8xf32>
    %8 = vector.multi_reduction <add>, %7, %cst_4 [1] : vector<8x256xf32> to vector<8xf32>
    %9 = vector.shape_cast %8 : vector<8xf32> to vector<8x1xf32>
    %10 = arith.addf %1, %9 : vector<8x1xf32>
    %c1 = arith.constant 1 : index
    %c0_5 = arith.constant 0 : index
    %c0_6 = arith.constant 0 : index
    %11 = vector.load %arg1[%c1, %c0_5, %c0_6] : memref<2x8x256xf32, #tpu.memory_space<vmem>>, vector<1x8x256xf32>
    %12 = vector.shape_cast %11 : vector<1x8x256xf32> to vector<8x256xf32>
    %cst_7 = arith.constant dense<0.000000e+00> : vector<8xf32>
    %13 = vector.multi_reduction <add>, %12, %cst_7 [1] : vector<8x256xf32> to vector<8xf32>
    %14 = vector.shape_cast %13 : vector<8xf32> to vector<8x1xf32>
    %15 = arith.addf %6, %14 : vector<8x1xf32>
    %16 = arith.mulf %12, %12 : vector<8x256xf32>
    %cst_8 = arith.constant dense<0.000000e+00> : vector<8xf32>
    %17 = vector.multi_reduction <add>, %16, %cst_8 [1] : vector<8x256xf32> to vector<8xf32>
    %18 = vector.shape_cast %17 : vector<8xf32> to vector<8x1xf32>
    %19 = arith.addf %10, %18 : vector<8x1xf32>
    %c0_9 = arith.constant 0 : index
    %c0_10 = arith.constant 0 : index
    %c0_11 = arith.constant 0 : index
    %20 = vector.load %arg2[%c0_9, %c0_10, %c0_11] : memref<1x8x1xf32, #tpu.memory_space<vmem>>, vector<1x8x1xf32>
    %21 = vector.shape_cast %20 : vector<1x8x1xf32> to vector<8x1xf32>
    %22 = vector.shape_cast %15 : vector<8x1xf32> to vector<1x8x1xf32>
    tpu.vector_store %arg2[%c0_9, %c0_10, %c0_11], %22 {strides = array<i32>} : memref<1x8x1xf32, #tpu.memory_space<vmem>>, vector<1x8x1xf32>,
    %c0_12 = arith.constant 0 : index
    %c0_13 = arith.constant 0 : index
    %c0_14 = arith.constant 0 : index
    %23 = vector.load %arg3[%c0_12, %c0_13, %c0_14] : memref<1x8x1xf32, #tpu.memory_space<vmem>>, vector<1x8x1xf32>
    %24 = vector.shape_cast %23 : vector<1x8x1xf32> to vector<8x1xf32>
    %25 = vector.shape_cast %19 : vector<8x1xf32> to vector<1x8x1xf32>
    tpu.vector_store %arg3[%c0_12, %c0_13, %c0_14], %25 {strides = array<i32>} : memref<1x8x1xf32, #tpu.memory_space<vmem>>, vector<1x8x1xf32>,
    return
  }
  func.func @transform_0(%arg0: i32) -> (i32, i32, i32) {
    %c0_i32 = arith.constant 0 : i32
    %c0_i32_0 = arith.constant 0 : i32
    %c0_i32_1 = arith.constant 0 : i32
    return %arg0, %c0_i32, %c0_i32_0 : i32, i32, i32
  }
  func.func @transform_1(%arg0: i32) -> (i32, i32, i32) {
    %c0_i32 = arith.constant 0 : i32
    %c0_i32_0 = arith.constant 0 : i32
    %c0_i32_1 = arith.constant 0 : i32
    return %arg0, %c0_i32, %c0_i32_0 : i32, i32, i32
  }
  func.func @transform_2(%arg0: i32) -> (i32, i32, i32) {
    %c0_i32 = arith.constant 0 : i32
    %c0_i32_0 = arith.constant 0 : i32
    %c0_i32_1 = arith.constant 0 : i32
    return %arg0, %c0_i32, %c0_i32_0 : i32, i32, i32
  }
}

</mosaic_0001>

<llo_original>
// kernel: tpu_custom_call.1
$region0: #{tpu_custom_call.1}
  #allocation0 [shape = 'u32[]', space=smem, size = 0x4, offset = 0x4, fixed_abs, tag = 'smem constant byte address 0x4 - core index']
  #allocation1 [shape = 'u32[144,128]{1,0:T(1,128)}', space=vmem, size = 0x12000, scoped, tag = 'internal scratch']
  %s0 = inlined_call_operand.hbm [shape: f32[2,8,256], index: 0, kind: input, shape index: {}]
  %s1 = inlined_call_operand.vmem [shape: f32[1,8,1], index: 1, kind: output, shape index: {0}]
  %s2 = inlined_call_operand.vmem [shape: f32[1,8,1], index: 2, kind: output, shape index: {1}]
  %3 = xla_tuple %s1, %s2
  %s4 = sld [smem:[#allocation0]]
  $region26: #{tpu_custom_call.1} parent=0
    _
  %s6 = ssub.s32 1, %s4
  %s7 = scalar_select 0, %s6, %s4
  $region1: #{tpu_custom_call.1} parent=0
    #allocation2 [shape = 'u8[16384]{0}', space=vmem, size = 0x4000, scoped, tag = 'input window, operand 0, single buffered']
    #allocation3 [shape = 's32[1]{0}', space=sflag, size = 0x4, scoped, tag = 'scoped memory for tpu_custom_call.1']
    %8 = vsyncpa [#allocation3], 0
    // Predicated region
    $region2: #{tpu_custom_call.1} parent=1 // pred_check
      _
    $region3: #{tpu_custom_call.1} parent=1 // pred_check_branch
      %10 = sbr.rel (0) target = $region5
    $region4: #{tpu_custom_call.1} parent=1 // pred_region
      %s12 = ssub.s32 512, 512
      %13 = vsyncadd [#allocation3], %s12
      %s14 = sshll.u32 [#allocation2], 4
      %s15 = int_to_ptr.vmem [resolvable:$true] %s14
      %20 = dma.hbm_to_vmem [thread:$0]  %s0, 512, %s15, [#allocation3], 256, 256, 16
    $region5: #{tpu_custom_call.1} parent=1 // pred_fallthru
      _
    // Predicated region
    $region6: #{tpu_custom_call.1} parent=1 // pred_check
      _
    $region7: #{tpu_custom_call.1} parent=1 // pred_check_branch
      %22 = sbr.rel (0) target = $region9
    $region8: #{tpu_custom_call.1} parent=1 // pred_region
      %23 = dma.done [#allocation3], 512
    $region9: #{tpu_custom_call.1} parent=1 // pred_fallthru
      _
    %v24 = vld [vmem:[#allocation2] sm:$0xff]
    %v25 = vld [vmem:[#allocation2 + $0x8] sm:$0xff]
    %v26 = vadd.f32 %v24, %v25
    %27 = vadd.xlane.f32.xlu0 %v26
    %v28 = vpop.xlane.xlu0 %27
    %v29 = vadd.f32 %v28, 0.0
    %v30 = vmul.f32 %v24, %v24
    %v31 = vmul.f32 %v25, %v25
    %v32 = vadd.f32 %v30, %v31
    %33 = vadd.xlane.f32.xlu0 %v32
    %v34 = vpop.xlane.xlu0 %33
    %v35 = vadd.f32 %v34, 0.0
    %s36 = scalar_lea.vmem [#allocation2], 16
    %v37 = vld [vmem:[%s36] sm:$0xff]
    %v38 = vld [vmem:[%s36 + $0x8] sm:$0xff]
    %v39 = vadd.f32 %v37, %v38
    %40 = vadd.xlane.f32.xlu0 %v39
    %v41 = vpop.xlane.xlu0 %40
    %v42 = vadd.f32 %v29, %v41
    %v43 = vmul.f32 %v37, %v37
    %v44 = vmul.f32 %v38, %v38
    %v45 = vadd.f32 %v43, %v44
    %46 = vadd.xlane.f32.xlu0 %v45
    %v47 = vpop.xlane.xlu0 %46
    %v48 = vadd.f32 %v35, %v47
    %vm49 = vcmask 7168
    %50 = vst.msk [vmem:[%s1] sm:$0xff] %vm49, %v42
    %51 = vst.msk [vmem:[%s2] sm:$0xff] %vm49, %v48
    // Predicated region
    $region10: #{tpu_custom_call.1} parent=1 // pred_check
      _
    $region11: #{tpu_custom_call.1} parent=1 // pred_check_branch
      %53 = sbr.rel (0) target = $region13
    $region12: #{tpu_custom_call.1} parent=1 // pred_region
      _
    $region13: #{tpu_custom_call.1} parent=1 // pred_fallthru
      _
    // Predicated region
    $region14: #{tpu_custom_call.1} parent=1 // pred_check
      _
    $region15: #{tpu_custom_call.1} parent=1 // pred_check_branch
      %55 = sbr.rel (0) target = $region17
    $region16: #{tpu_custom_call.1} parent=1 // pred_region
      _
    $region17: #{tpu_custom_call.1} parent=1 // pred_fallthru
      _
    // Predicated region
    $region18: #{tpu_custom_call.1} parent=1 // pred_check
      _
    $region19: #{tpu_custom_call.1} parent=1 // pred_check_branch
      %57 = sbr.rel (0) target = $region21
    $region20: #{tpu_custom_call.1} parent=1 // pred_region
      _
    $region21: #{tpu_custom_call.1} parent=1 // pred_fallthru
      _
    // Predicated region
    $region22: #{tpu_custom_call.1} parent=1 // pred_check
      _
    $region23: #{tpu_custom_call.1} parent=1 // pred_check_branch
      %59 = sbr.rel (0) target = $region25
    $region24: #{tpu_custom_call.1} parent=1 // pred_region
      _
    $region25: #{tpu_custom_call.1} parent=1 // pred_fallthru
      _
    %60 = vsyncpa [#allocation3], 1

</llo_original>
